<compile_context>
chip_gen: v6e
topology: v6e:2x2x1
jax: 0.10.0
libtpu: 0.0.40
codegen_flags: <defaults>
</compile_context>

<pallas_src>
import jax
import jax.numpy as jnp
from jax.experimental import pallas as pl
from jax.experimental.pallas import tpu as pltpu


def film_kernel(x_ref, gamma_ref, beta_ref, out_ref):
    # x_ref:     (ROWS, T_TILE)  rows = flattened (batch, channel)
    # gamma_ref: (ROWS, 1)       per-row scale, broadcast over lanes
    # beta_ref:  (ROWS, 1)       per-row shift, broadcast over lanes
    # out_ref:   (ROWS, T_TILE)
    out_ref[...] = (x_ref[...] * gamma_ref[...] + beta_ref[...]).astype(out_ref.dtype)


def _block_size(dim, align, cap):
    """Largest block <= cap that is a multiple of `align` and divides `dim`.
    Falls back to the full dim when dim isn't align-divisible (allowed by Pallas)."""
    if dim <= cap or dim % align != 0:
        return dim
    best = align
    b = align
    while b <= cap:
        if dim % b == 0:
            best = b
        b += align
    return best


def film_forward(x, cond_embedding, weight, bias, *, rows_cap=256, lanes_cap=2048):
    """x: [B, C, T], cond_embedding: [B, E], weight: [2C, E], bias: [2C]."""
    B, C, T = x.shape

    # ---- Projection hoisted out of the kernel: one tiny GEMM in XLA (f32). ----
    proj = (jnp.dot(cond_embedding.astype(jnp.float32),
                    weight.astype(jnp.float32).T,
                    preferred_element_type=jnp.float32)
            + bias.astype(jnp.float32)[None, :])                 # [B, 2C]
    gamma = proj[:, :C].reshape(B * C, 1)                        # C on sublanes
    beta = proj[:, C:].reshape(B * C, 1)

    # ---- Lane-dense 2-D tiling of the memory-bound elementwise FiLM part. ----
    rows = B * C
    x2 = x.reshape(rows, T)                                      # free reshape (contiguous)

    block_r = _block_size(rows, 8, rows_cap)                     # sublane-aligned
    block_t = _block_size(T, 128, lanes_cap)                     # lane-aligned, dense stores
    grid = (rows // block_r, T // block_t)

    out2 = pl.pallas_call(
        film_kernel,
        out_shape=jax.ShapeDtypeStruct((rows, T), x.dtype),
        grid_spec=pltpu.PrefetchScalarGridSpec(
            num_scalar_prefetch=0,
            grid=grid,
            in_specs=[
                pl.BlockSpec((block_r, block_t), lambda r, t: (r, t)),  # x tile
                pl.BlockSpec((block_r, 1), lambda r, t: (r, 0)),        # gamma rows
                pl.BlockSpec((block_r, 1), lambda r, t: (r, 0)),        # beta rows
            ],
            out_specs=pl.BlockSpec((block_r, block_t), lambda r, t: (r, t)),
        ),
        compiler_params=pltpu.CompilerParams(
            dimension_semantics=("parallel", "parallel"),
            vmem_limit_bytes=32 * 1024 * 1024,   # safe on v5e/v6e/v7x; blocks stay well under
        ),
    )(x2, gamma, beta)

    return out2.reshape(B, C, T)


if __name__ == "__main__":
    # Small shapes implied by the forward: x [B, C, T], cond [B, E]
    B, C, T, E = 2, 4, 16, 32   # feature_dim = C, embedding_dim = E

    key = jax.random.PRNGKey(0)
    kx, kc, kw, kb = jax.random.split(key, 4)

    x = jax.random.normal(kx, (B, C, T), dtype=jnp.float32)
    cond = jax.random.normal(kc, (B, E), dtype=jnp.float32)

    # Deterministic synthetic parameters (nn.Linear(E, 2C) shapes)
    weight = jax.random.normal(kw, (2 * C, E), dtype=jnp.float32) * 0.1
    bias = jax.random.normal(kb, (2 * C,), dtype=jnp.float32) * 0.1

    out = film_forward(x, cond, weight, bias)
    out = jax.block_until_ready(out)

    # Pure-JAX reference check (same math as the PyTorch forward)
    proj_ref = cond @ weight.T + bias
    gamma_ref = proj_ref[:, :C]
    beta_ref = proj_ref[:, C:]
    ref = x * gamma_ref[:, :, None] + beta_ref[:, :, None]

    assert out.shape == (B, C, T)
    assert jnp.allclose(out, ref, atol=1e-5, rtol=1e-5), "mismatch vs reference"

    print("KERNEL_OK")
</pallas_src>

<mosaic_0001>
module attributes {stable_mosaic.version = 11 : i64} {
  func.func @film_kernel(%arg0: i32, %arg1: i32, %arg2: memref<8x16xf32, #tpu.memory_space<vmem>>, %arg3: memref<8x1xf32, #tpu.memory_space<vmem>>, %arg4: memref<8x1xf32, #tpu.memory_space<vmem>>, %arg5: memref<8x16xf32, #tpu.memory_space<vmem>>) attributes {dimension_semantics = [#tpu.dimension_semantics<parallel>, #tpu.dimension_semantics<parallel>], iteration_bounds = array<i64: 1, 1>, scalar_prefetch = 0 : i64, scratch_operands = 0 : i64, tpu.core_type = #tpu.core_type<tc>, window_params = [{transform_indices = @transform_0, window_bounds = array<i64: 8, 16>}, {transform_indices = @transform_1, window_bounds = array<i64: 8, 1>}, {transform_indices = @transform_2, window_bounds = array<i64: 8, 1>}, {transform_indices = @transform_3, window_bounds = array<i64: 8, 16>}]} {
    %c0 = arith.constant 0 : index
    %c0_0 = arith.constant 0 : index
    %0 = vector.load %arg2[%c0, %c0_0] : memref<8x16xf32, #tpu.memory_space<vmem>>, vector<8x16xf32>
    %c0_1 = arith.constant 0 : index
    %c0_2 = arith.constant 0 : index
    %1 = vector.load %arg3[%c0_1, %c0_2] : memref<8x1xf32, #tpu.memory_space<vmem>>, vector<8x1xf32>
    %2 = vector.broadcast %1 : vector<8x1xf32> to vector<8x16xf32>
    %3 = arith.mulf %0, %2 : vector<8x16xf32>
    %c0_3 = arith.constant 0 : index
    %c0_4 = arith.constant 0 : index
    %4 = vector.load %arg4[%c0_3, %c0_4] : memref<8x1xf32, #tpu.memory_space<vmem>>, vector<8x1xf32>
    %5 = vector.broadcast %4 : vector<8x1xf32> to vector<8x16xf32>
    %6 = arith.addf %3, %5 : vector<8x16xf32>
    %c0_5 = arith.constant 0 : index
    %c0_6 = arith.constant 0 : index
    %7 = vector.load %arg5[%c0_5, %c0_6] : memref<8x16xf32, #tpu.memory_space<vmem>>, vector<8x16xf32>
    tpu.vector_store %arg5[%c0_5, %c0_6], %6 {strides = array<i32>} : memref<8x16xf32, #tpu.memory_space<vmem>>, vector<8x16xf32>,
    return
  }
  func.func @transform_0(%arg0: i32, %arg1: i32) -> (i32, i32) {
    %c0_i32 = arith.constant 0 : i32
    return %arg0, %arg1 : i32, i32
  }
  func.func @transform_1(%arg0: i32, %arg1: i32) -> (i32, i32) {
    %c0_i32 = arith.constant 0 : i32
    %c0_i32_0 = arith.constant 0 : i32
    return %arg0, %c0_i32 : i32, i32
  }
  func.func @transform_2(%arg0: i32, %arg1: i32) -> (i32, i32) {
    %c0_i32 = arith.constant 0 : i32
    %c0_i32_0 = arith.constant 0 : i32
    return %arg0, %c0_i32 : i32, i32
  }
  func.func @transform_3(%arg0: i32, %arg1: i32) -> (i32, i32) {
    %c0_i32 = arith.constant 0 : i32
    return %arg0, %arg1 : i32, i32
  }
}

</mosaic_0001>

<llo_original>
// kernel: tpu_custom_call.1
$region0: #{tpu_custom_call.1}
  #allocation0 [shape = 'u32[]', space=smem, size = 0x4, offset = 0x4, fixed_abs, tag = 'smem constant byte address 0x4 - core index']
  #allocation1 [shape = 'u32[144,128]{1,0:T(1,128)}', space=vmem, size = 0x12000, scoped, tag = 'internal scratch']
  %s0 = inlined_call_operand.vmem [shape: f32[8,16], index: 0, kind: input, shape index: {}]
  %s1 = inlined_call_operand.vmem [shape: f32[8,1], index: 1, kind: input, shape index: {}]
  %s2 = inlined_call_operand.vmem [shape: f32[8,1], index: 2, kind: input, shape index: {}]
  %s3 = inlined_call_operand.hbm [shape: f32[8,16], index: 3, kind: output, shape index: {}]
  %s4 = sld [smem:[#allocation0]]
  $region22: #{tpu_custom_call.1} parent=0
    _
  %s6 = ssub.s32 1, %s4
  %s7 = scalar_select 0, %s6, %s4
  $region1: #{tpu_custom_call.1} parent=0
    #allocation2 [shape = 'u8[4096]{0}', space=vmem, size = 0x1000, scoped, tag = 'output window, operand 0, single buffered']
    #allocation3 [shape = 's32[1]{0}', space=sflag, size = 0x4, scoped, tag = 'scoped memory for tpu_custom_call.1']
    %8 = vsyncpa [#allocation3], 0
    // Predicated region
    $region2: #{tpu_custom_call.1} parent=1 // pred_check
      _
    $region3: #{tpu_custom_call.1} parent=1 // pred_check_branch
      %10 = sbr.rel (0) target = $region5
    $region4: #{tpu_custom_call.1} parent=1 // pred_region
      _
    $region5: #{tpu_custom_call.1} parent=1 // pred_fallthru
      _
    // Predicated region
    $region6: #{tpu_custom_call.1} parent=1 // pred_check
      _
    $region7: #{tpu_custom_call.1} parent=1 // pred_check_branch
      %12 = sbr.rel (0) target = $region9
    $region8: #{tpu_custom_call.1} parent=1 // pred_region
      _
    $region9: #{tpu_custom_call.1} parent=1 // pred_fallthru
      _
    // Predicated region
    $region10: #{tpu_custom_call.1} parent=1 // pred_check
      _
    $region11: #{tpu_custom_call.1} parent=1 // pred_check_branch
      %14 = sbr.rel (0) target = $region13
    $region12: #{tpu_custom_call.1} parent=1 // pred_region
      _
    $region13: #{tpu_custom_call.1} parent=1 // pred_fallthru
      _
    %v15 = vld [vmem:[%s0] sm:$0xff]
    %v16 = vld [vmem:[%s1] sm:$0xff]
    %18 = vset.pattern.permute.xlu0 0
    %19 = vperm.xlu0 %18, %v16
    %v20 = vpop.permute.xlu0 %19
    %v22 = vmul.f32 %v15, %v20
    %v23 = vld [vmem:[%s2] sm:$0xff]
    %25 = vset.pattern.permute.xlu0 0
    %26 = vperm.xlu0 %25, %v23
    %v27 = vpop.permute.xlu0 %26
    %v29 = vadd.f32 %v22, %v27
    %vm30 = vcmask 130048
    %31 = vst.msk [vmem:[#allocation2] sm:$0xff] %vm30, %v29
    // Predicated region
    $region14: #{tpu_custom_call.1} parent=1 // pred_check
      _
    $region15: #{tpu_custom_call.1} parent=1 // pred_check_branch
      %33 = sbr.rel (0) target = $region17
    $region16: #{tpu_custom_call.1} parent=1 // pred_region
      %s35 = ssub.s32 128, 128
      %36 = vsyncadd [#allocation3], %s35
      %s38 = sshll.u32 [#allocation2], 4
      %s39 = int_to_ptr.vmem [resolvable:$true] %s38
      %41 = dma.vmem_to_hbm [thread:$0]  %s39, 128, %s3, [#allocation3]
    $region17: #{tpu_custom_call.1} parent=1 // pred_fallthru
      _
    // Predicated region
    $region18: #{tpu_custom_call.1} parent=1 // pred_check
      _
    $region19: #{tpu_custom_call.1} parent=1 // pred_check_branch
      %43 = sbr.rel (0) target = $region21
    $region20: #{tpu_custom_call.1} parent=1 // pred_region
      %44 = dma.done [#allocation3], 128
    $region21: #{tpu_custom_call.1} parent=1 // pred_fallthru
      _
    %45 = vsyncpa [#allocation3], 1

</llo_original>
